<compile_context>
chip_gen: v5e
topology: v5e:2x2
jax: 0.10.0
libtpu: 0.0.40
codegen_flags: <defaults>
</compile_context>

<pallas_src>
import jax
import jax.numpy as jnp
from jax.experimental import pallas as pl
from jax.experimental.pallas import tpu as pltpu


# --------------------------------------------------------------------------
# Chip / tiling helpers
# --------------------------------------------------------------------------
def _round_up(x, m):
    return (x + m - 1) // m * m


def _tpu_vmem_capacity():
    try:
        return int(pltpu.get_tpu_info().vmem_capacity_bytes)
    except Exception:
        return 64 << 20  # conservative default (v7x per-TensorCore VMEM)


def _choose_row_tile(n_rows, g, h, k, itemsize, budget):
    """Largest row tile (multiple of 8) whose pipeline buffers fit `budget`."""
    # Streamed weight + bias block (double-buffered) + slack for small buffers.
    fixed = 2 * (h * h + h) * itemsize + (2 << 20)
    # Per row of tm: x block + out block (both double-buffered) + f32 carry.
    per_row = h * (2 * g * itemsize + 2 * k * itemsize + 4 * g)
    tm = (budget - fixed) // per_row
    tm = min(tm, 2048, _round_up(n_rows, 8))
    tm = max(8, (tm // 8) * 8)
    # TODO(synk): on v7x (2 TensorCores) prefer >= 2 row tiles + CORE_PARALLEL
    # when n_rows would otherwise fit in a single tile, so both cores stay busy.
    return int(tm)


# --------------------------------------------------------------------------
# Fused kernel: ResBlock chain (streamed weights) + group selection
# --------------------------------------------------------------------------
def _fused_kernel(wsel_ref, x_ref, w_ref, b_ref, o_ref, act_ref):
    # wsel_ref: (K, G) f32 in SMEM (scalar prefetch)
    # x_ref:    (G, tm, H) one row tile of all G groups (resident across r)
    # w_ref:    (1, H, H)  ResBlock-r weight, pre-transposed (in-dim first)
    # b_ref:    (1, 1, H)  ResBlock-r bias
    # o_ref:    (K, tm, H) output tile; written once at r == R-1
    # act_ref:  (G*tm, H)  f32 residual carry across the r grid axis
    r = pl.program_id(1)
    num_r = pl.num_programs(1)
    G, tm, H = x_ref.shape
    K = o_ref.shape[0]

    @pl.when(r == 0)
    def _():
        # Fold the group axis into the matmul M dim (leading-dim merge only).
        act_ref[...] = x_ref[...].reshape(G * tm, H).astype(jnp.float32)

    act = act_ref[...]                                           # (G*tm, H) f32
    # MXU operands in the model dtype (bf16 = full rate); accumulate in f32.
    z = jnp.dot(act.astype(w_ref.dtype), w_ref[0],
                preferred_element_type=jnp.float32)
    z = z + b_ref[0].astype(jnp.float32)                         # (1, H) bias
    act = act + z * jax.nn.sigmoid(z)                            # SiLU (EUP)

    @pl.when(r < num_r - 1)
    def _():
        act_ref[...] = act                                       # carry to next r

    @pl.when(r == num_r - 1)
    def _():
        y = act.reshape(G, tm, H)
        for k in range(K):                                       # K, G tiny & static
            sel = wsel_ref[k, 0] * y[0]
            for g in range(1, G):
                sel = sel + wsel_ref[k, g] * y[g]
            o_ref[k] = sel.astype(o_ref.dtype)


# --------------------------------------------------------------------------
# Wrapper
# --------------------------------------------------------------------------
def select_k_groups(x, w_stack, b_stack, w_sel):
    """x: (G, B, S, H); w_stack: (R, H, H) nn.Linear weights (out, in);
    b_stack: (R, 1, H); w_sel: (K, G).  Returns (B, S, H, K), matching
    SelectKGroups.forward."""
    G, B, S, H = x.shape
    R = w_stack.shape[0]
    K = w_sel.shape[0]
    N = B * S

    if R == 0:
        # Degenerate config (no ResBlocks): plain selection, no kernel needed.
        y = jnp.transpose(x, (1, 2, 3, 0))
        return jnp.einsum("bshg,kg->bshk", y, w_sel).astype(x.dtype)

    x_gnh = x.reshape(G, N, H)                                   # free reshape
    w_t = jnp.swapaxes(w_stack, 1, 2)                            # in-dim first
    wsel = w_sel.astype(jnp.float32)

    itemsize = jnp.dtype(x.dtype).itemsize
    capacity = _tpu_vmem_capacity()
    budget = max(16 << 20, capacity - max(8 << 20, capacity // 8))
    tm = _choose_row_tile(N, G, H, K, itemsize, budget)
    n_tiles = pl.cdiv(N, tm)

    est_vmem = (2 * (H * H + H) * itemsize                       # streamed w + b
                + tm * H * (2 * G + 2 * K) * itemsize            # x + out blocks
                + G * tm * H * 4)                                # f32 carry
    vmem_limit = int(min(capacity, max(32 << 20, est_vmem + (8 << 20))))

    flops = 2 * R * G * N * H * H + 2 * K * G * N * H
    cost = pl.CostEstimate(
        flops=flops,
        transcendentals=R * G * N * H,
        bytes_accessed=itemsize * (G * N * H + n_tiles * R * (H * H + H)
                                   + K * N * H) + 4 * K * G,
    )

    out = pl.pallas_call(
        _fused_kernel,
        out_shape=jax.ShapeDtypeStruct((K, N, H), x.dtype),
        grid_spec=pltpu.PrefetchScalarGridSpec(
            num_scalar_prefetch=1,                               # w_sel -> SMEM
            grid=(n_tiles, R),
            in_specs=[
                pl.BlockSpec((G, tm, H), lambda i, r, ws: (0, i, 0)),
                pl.BlockSpec((1, H, H), lambda i, r, ws: (r, 0, 0)),
                pl.BlockSpec((1, 1, H), lambda i, r, ws: (r, 0, 0)),
            ],
            out_specs=pl.BlockSpec((K, tm, H), lambda i, r, ws: (0, i, 0)),
            scratch_shapes=[pltpu.VMEM((G * tm, H), jnp.float32)],
        ),
        compiler_params=pltpu.CompilerParams(
            # TODO(synk): switch to pltpu.CORE_PARALLEL on v7x once 2-TC
            # sharding of the row-tile axis is confirmed in a trace.
            dimension_semantics=("parallel", "arbitrary"),
            vmem_limit_bytes=vmem_limit,
        ),
        cost_estimate=cost,
    )(wsel, x_gnh, w_t, b_stack)

    out = out.reshape(K, B, S, H)
    # TODO(synk): skip this transpose if the consumer accepts (K, B, S, H);
    # a K-minor (lane-sparse) store from the kernel itself would be slower.
    return jnp.transpose(out, (1, 2, 3, 0))                      # (B, S, H, K)


# --------------------------------------------------------------------------
# Pure-JAX reference (nn.Linear / permute semantics of the PyTorch module)
# --------------------------------------------------------------------------
def _reference(x, w_stack, b_stack, w_sel):
    y = x
    for r in range(w_stack.shape[0]):
        z = jnp.einsum("gbsh,ih->gbsi", y, w_stack[r]) + b_stack[r, 0]
        y = y + z * jax.nn.sigmoid(z)
    y_perm = jnp.transpose(y, (1, 2, 3, 0))                      # (B, S, H, G)
    return jnp.einsum("bshg,kg->bshk", y_perm, w_sel)


if __name__ == "__main__":
    # Module hyper-parameters (small, consistent with __init__ signature)
    num_group, top_k_group, hidden_size, resnet_num = 4, 2, 32, 2
    batch, seq = 2, 8

    key = jax.random.PRNGKey(0)
    kx, kw, kb, ks = jax.random.split(key, 4)

    # Input: (num_group, batch, seq, hidden)
    x = jax.random.normal(kx, (num_group, batch, seq, hidden_size), dtype=jnp.float32)

    # NOTE: the module zero-inits ResBlock weights; small random weights are used
    # here so the correctness check actually exercises the matmul path.
    w_stack = jax.random.normal(
        kw, (resnet_num, hidden_size, hidden_size), dtype=jnp.float32
    ) / (hidden_size ** 0.5)
    bbound = 1.0 / (hidden_size ** 0.5)
    b_stack = jax.random.uniform(
        kb, (resnet_num, 1, hidden_size), minval=-bbound, maxval=bbound,
        dtype=jnp.float32
    )
    sbound = 1.0 / (num_group ** 0.5)
    w_sel = jax.random.uniform(
        ks, (top_k_group, num_group), minval=-sbound, maxval=sbound,
        dtype=jnp.float32
    )

    out = jax.block_until_ready(select_k_groups(x, w_stack, b_stack, w_sel))
    ref = _reference(x, w_stack, b_stack, w_sel)

    assert out.shape == (batch, seq, hidden_size, top_k_group), out.shape
    assert out.dtype == jnp.float32
    assert jnp.allclose(out, ref, atol=1e-5, rtol=1e-4), float(jnp.max(jnp.abs(out - ref)))

    print("KERNEL_OK")
</pallas_src>

<mosaic_0001>
module attributes {stable_mosaic.version = 11 : i64} {
  func.func @_fused_kernel(%arg0: i32, %arg1: i32, %arg2: memref<2x4xf32, #tpu.memory_space<smem>>, %arg3: memref<4x16x32xf32, #tpu.memory_space<vmem>>, %arg4: memref<1x32x32xf32, #tpu.memory_space<vmem>>, %arg5: memref<1x1x32xf32, #tpu.memory_space<vmem>>, %arg6: memref<2x16x32xf32, #tpu.memory_space<vmem>>, %arg7: memref<64x32xf32, #tpu.memory_space<vmem>>) attributes {dimension_semantics = [#tpu.dimension_semantics<parallel>, #tpu.dimension_semantics<arbitrary>], iteration_bounds = array<i64: 1, 2>, scalar_prefetch = 1 : i64, scratch_operands = 1 : i64, tpu.core_type = #tpu.core_type<tc>, window_params = [{transform_indices = @transform_0, window_bounds = array<i64: 4, 16, 32>}, {transform_indices = @transform_1, window_bounds = array<i64: 1, 32, 32>}, {transform_indices = @transform_2, window_bounds = array<i64: 1, 1, 32>}, {transform_indices = @transform_3, window_bounds = array<i64: 2, 16, 32>}]} {
    %c0_i32 = arith.constant 0 : i32
    %0 = arith.cmpi eq, %arg1, %c0_i32 : i32
    %1 = arith.extui %0 : i1 to i32
    %c0_i32_0 = arith.constant 0 : i32
    %2 = arith.cmpi ne, %1, %c0_i32_0 : i32
    scf.if %2 {
      %c0_12 = arith.constant 0 : index
      %c0_13 = arith.constant 0 : index
      %c0_14 = arith.constant 0 : index
      %24 = vector.load %arg3[%c0_12, %c0_13, %c0_14] : memref<4x16x32xf32, #tpu.memory_space<vmem>>, vector<4x16x32xf32>
      %25 = vector.shape_cast %24 : vector<4x16x32xf32> to vector<64x32xf32>
      %c0_15 = arith.constant 0 : index
      %c0_16 = arith.constant 0 : index
      %26 = vector.load %arg7[%c0_15, %c0_16] : memref<64x32xf32, #tpu.memory_space<vmem>>, vector<64x32xf32>
      tpu.vector_store %arg7[%c0_15, %c0_16], %25 {strides = array<i32>} : memref<64x32xf32, #tpu.memory_space<vmem>>, vector<64x32xf32>,
    } else {
    }
    %c0 = arith.constant 0 : index
    %c0_1 = arith.constant 0 : index
    %3 = vector.load %arg7[%c0, %c0_1] : memref<64x32xf32, #tpu.memory_space<vmem>>, vector<64x32xf32>
    %c0_2 = arith.constant 0 : index
    %c0_3 = arith.constant 0 : index
    %c0_4 = arith.constant 0 : index
    %4 = vector.load %arg4[%c0_2, %c0_3, %c0_4] : memref<1x32x32xf32, #tpu.memory_space<vmem>>, vector<1x32x32xf32>
    %5 = vector.shape_cast %4 : vector<1x32x32xf32> to vector<32x32xf32>
    %cst = arith.constant dense<0.000000e+00> : vector<64x32xf32>
    %6 = tpu.matmul %3, %5, %cst {dimension_numbers = #tpu.dot_dimension_numbers<[1], [0], [0], [1], [0, 0, 1, 1], [], []>} : vector<64x32xf32>, vector<32x32xf32>, vector<64x32xf32> -> vector<64x32xf32>
    %c0_5 = arith.constant 0 : index
    %c0_6 = arith.constant 0 : index
    %c0_7 = arith.constant 0 : index
    %7 = vector.load %arg5[%c0_5, %c0_6, %c0_7] : memref<1x1x32xf32, #tpu.memory_space<vmem>>, vector<1x1x32xf32>
    %8 = vector.shape_cast %7 : vector<1x1x32xf32> to vector<1x32xf32>
    %9 = vector.broadcast %8 : vector<1x32xf32> to vector<64x32xf32>
    %10 = arith.addf %6, %9 : vector<64x32xf32>
    %11 = arith.negf %10 : vector<64x32xf32>
    %12 = math.exp %11 : vector<64x32xf32>
    %cst_8 = arith.constant 1.000000e+00 : f32
    %13 = vector.broadcast %cst_8 : f32 to vector<64x32xf32>
    %14 = arith.addf %13, %12 : vector<64x32xf32>
    %15 = arith.divf %13, %14 : vector<64x32xf32>
    %16 = arith.mulf %10, %15 : vector<64x32xf32>
    %17 = arith.addf %3, %16 : vector<64x32xf32>
    %c1_i32 = arith.constant 1 : i32
    %18 = arith.cmpi slt, %arg1, %c1_i32 : i32
    %19 = arith.extui %18 : i1 to i32
    %c0_i32_9 = arith.constant 0 : i32
    %20 = arith.cmpi ne, %19, %c0_i32_9 : i32
    scf.if %20 {
      %c0_12 = arith.constant 0 : index
      %c0_13 = arith.constant 0 : index
      %24 = vector.load %arg7[%c0_12, %c0_13] : memref<64x32xf32, #tpu.memory_space<vmem>>, vector<64x32xf32>
      tpu.vector_store %arg7[%c0_12, %c0_13], %17 {strides = array<i32>} : memref<64x32xf32, #tpu.memory_space<vmem>>, vector<64x32xf32>,
    } else {
    }
    %c1_i32_10 = arith.constant 1 : i32
    %21 = arith.cmpi eq, %arg1, %c1_i32_10 : i32
    %22 = arith.extui %21 : i1 to i32
    %c0_i32_11 = arith.constant 0 : i32
    %23 = arith.cmpi ne, %22, %c0_i32_11 : i32
    scf.if %23 {
      %24 = vector.shape_cast %17 : vector<64x32xf32> to vector<4x16x32xf32>
      %c0_12 = arith.constant 0 : index
      %c0_13 = arith.constant 0 : index
      %25 = memref.load %arg2[%c0_12, %c0_13] : memref<2x4xf32, #tpu.memory_space<smem>>
      %26 = vector.extract_strided_slice %24 {offsets = [0, 0, 0], sizes = [1, 16, 32], strides = [1, 1, 1]} : vector<4x16x32xf32> to vector<1x16x32xf32>
      %27 = vector.shape_cast %26 : vector<1x16x32xf32> to vector<16x32xf32>
      %28 = vector.broadcast %25 : f32 to vector<16x32xf32>
      %29 = arith.mulf %28, %27 : vector<16x32xf32>
      %c0_14 = arith.constant 0 : index
      %c1 = arith.constant 1 : index
      %30 = memref.load %arg2[%c0_14, %c1] : memref<2x4xf32, #tpu.memory_space<smem>>
      %31 = vector.extract_strided_slice %24 {offsets = [1, 0, 0], sizes = [1, 16, 32], strides = [1, 1, 1]} : vector<4x16x32xf32> to vector<1x16x32xf32>
      %32 = vector.shape_cast %31 : vector<1x16x32xf32> to vector<16x32xf32>
      %33 = vector.broadcast %30 : f32 to vector<16x32xf32>
      %34 = arith.mulf %33, %32 : vector<16x32xf32>
      %35 = arith.addf %29, %34 : vector<16x32xf32>
      %c0_15 = arith.constant 0 : index
      %c2 = arith.constant 2 : index
      %36 = memref.load %arg2[%c0_15, %c2] : memref<2x4xf32, #tpu.memory_space<smem>>
      %37 = vector.extract_strided_slice %24 {offsets = [2, 0, 0], sizes = [1, 16, 32], strides = [1, 1, 1]} : vector<4x16x32xf32> to vector<1x16x32xf32>
      %38 = vector.shape_cast %37 : vector<1x16x32xf32> to vector<16x32xf32>
      %39 = vector.broadcast %36 : f32 to vector<16x32xf32>
      %40 = arith.mulf %39, %38 : vector<16x32xf32>
      %41 = arith.addf %35, %40 : vector<16x32xf32>
      %c0_16 = arith.constant 0 : index
      %c3 = arith.constant 3 : index
      %42 = memref.load %arg2[%c0_16, %c3] : memref<2x4xf32, #tpu.memory_space<smem>>
      %43 = vector.extract_strided_slice %24 {offsets = [3, 0, 0], sizes = [1, 16, 32], strides = [1, 1, 1]} : vector<4x16x32xf32> to vector<1x16x32xf32>
      %44 = vector.shape_cast %43 : vector<1x16x32xf32> to vector<16x32xf32>
      %45 = vector.broadcast %42 : f32 to vector<16x32xf32>
      %46 = arith.mulf %45, %44 : vector<16x32xf32>
      %47 = arith.addf %41, %46 : vector<16x32xf32>
      %c0_17 = arith.constant 0 : index
      %c0_18 = arith.constant 0 : index
      %c0_19 = arith.constant 0 : index
      %48 = vector.load %arg6[%c0_17, %c0_18, %c0_19] : memref<2x16x32xf32, #tpu.memory_space<vmem>>, vector<1x16x32xf32>
      %49 = vector.shape_cast %48 : vector<1x16x32xf32> to vector<16x32xf32>
      %50 = vector.shape_cast %47 : vector<16x32xf32> to vector<1x16x32xf32>
      tpu.vector_store %arg6[%c0_17, %c0_18, %c0_19], %50 {strides = array<i32>} : memref<2x16x32xf32, #tpu.memory_space<vmem>>, vector<1x16x32xf32>,
      %c1_20 = arith.constant 1 : index
      %c0_21 = arith.constant 0 : index
      %51 = memref.load %arg2[%c1_20, %c0_21] : memref<2x4xf32, #tpu.memory_space<smem>>
      %52 = vector.extract_strided_slice %24 {offsets = [0, 0, 0], sizes = [1, 16, 32], strides = [1, 1, 1]} : vector<4x16x32xf32> to vector<1x16x32xf32>
      %53 = vector.shape_cast %52 : vector<1x16x32xf32> to vector<16x32xf32>
      %54 = vector.broadcast %51 : f32 to vector<16x32xf32>
      %55 = arith.mulf %54, %53 : vector<16x32xf32>
      %c1_22 = arith.constant 1 : index
      %c1_23 = arith.constant 1 : index
      %56 = memref.load %arg2[%c1_22, %c1_23] : memref<2x4xf32, #tpu.memory_space<smem>>
      %57 = vector.extract_strided_slice %24 {offsets = [1, 0, 0], sizes = [1, 16, 32], strides = [1, 1, 1]} : vector<4x16x32xf32> to vector<1x16x32xf32>
      %58 = vector.shape_cast %57 : vector<1x16x32xf32> to vector<16x32xf32>
      %59 = vector.broadcast %56 : f32 to vector<16x32xf32>
      %60 = arith.mulf %59, %58 : vector<16x32xf32>
      %61 = arith.addf %55, %60 : vector<16x32xf32>
      %c1_24 = arith.constant 1 : index
      %c2_25 = arith.constant 2 : index
      %62 = memref.load %arg2[%c1_24, %c2_25] : memref<2x4xf32, #tpu.memory_space<smem>>
      %63 = vector.extract_strided_slice %24 {offsets = [2, 0, 0], sizes = [1, 16, 32], strides = [1, 1, 1]} : vector<4x16x32xf32> to vector<1x16x32xf32>
      %64 = vector.shape_cast %63 : vector<1x16x32xf32> to vector<16x32xf32>
      %65 = vector.broadcast %62 : f32 to vector<16x32xf32>
      %66 = arith.mulf %65, %64 : vector<16x32xf32>
      %67 = arith.addf %61, %66 : vector<16x32xf32>
      %c1_26 = arith.constant 1 : index
      %c3_27 = arith.constant 3 : index
      %68 = memref.load %arg2[%c1_26, %c3_27] : memref<2x4xf32, #tpu.memory_space<smem>>
      %69 = vector.extract_strided_slice %24 {offsets = [3, 0, 0], sizes = [1, 16, 32], strides = [1, 1, 1]} : vector<4x16x32xf32> to vector<1x16x32xf32>
      %70 = vector.shape_cast %69 : vector<1x16x32xf32> to vector<16x32xf32>
      %71 = vector.broadcast %68 : f32 to vector<16x32xf32>
      %72 = arith.mulf %71, %70 : vector<16x32xf32>
      %73 = arith.addf %67, %72 : vector<16x32xf32>
      %c1_28 = arith.constant 1 : index
      %c0_29 = arith.constant 0 : index
      %c0_30 = arith.constant 0 : index
      %74 = vector.load %arg6[%c1_28, %c0_29, %c0_30] : memref<2x16x32xf32, #tpu.memory_space<vmem>>, vector<1x16x32xf32>
      %75 = vector.shape_cast %74 : vector<1x16x32xf32> to vector<16x32xf32>
      %76 = vector.shape_cast %73 : vector<16x32xf32> to vector<1x16x32xf32>
      tpu.vector_store %arg6[%c1_28, %c0_29, %c0_30], %76 {strides = array<i32>} : memref<2x16x32xf32, #tpu.memory_space<vmem>>, vector<1x16x32xf32>,
    } else {
    }
    return
  }
  func.func @transform_0(%arg0: i32, %arg1: i32, %arg2: memref<2x4xf32, #tpu.memory_space<smem>>) -> (i32, i32, i32) {
    %c0_i32 = arith.constant 0 : i32
    %c0_i32_0 = arith.constant 0 : i32
    %c0_i32_1 = arith.constant 0 : i32
    return %c0_i32, %arg0, %c0_i32_0 : i32, i32, i32
  }
  func.func @transform_1(%arg0: i32, %arg1: i32, %arg2: memref<2x4xf32, #tpu.memory_space<smem>>) -> (i32, i32, i32) {
    %c0_i32 = arith.constant 0 : i32
    %c0_i32_0 = arith.constant 0 : i32
    %c0_i32_1 = arith.constant 0 : i32
    return %arg1, %c0_i32, %c0_i32_0 : i32, i32, i32
  }
  func.func @transform_2(%arg0: i32, %arg1: i32, %arg2: memref<2x4xf32, #tpu.memory_space<smem>>) -> (i32, i32, i32) {
    %c0_i32 = arith.constant 0 : i32
    %c0_i32_0 = arith.constant 0 : i32
    %c0_i32_1 = arith.constant 0 : i32
    return %arg1, %c0_i32, %c0_i32_0 : i32, i32, i32
  }
  func.func @transform_3(%arg0: i32, %arg1: i32, %arg2: memref<2x4xf32, #tpu.memory_space<smem>>) -> (i32, i32, i32) {
    %c0_i32 = arith.constant 0 : i32
    %c0_i32_0 = arith.constant 0 : i32
    %c0_i32_1 = arith.constant 0 : i32
    return %c0_i32, %arg0, %c0_i32_0 : i32, i32, i32
  }
}

</mosaic_0001>

<llo_original>
// kernel: tpu_custom_call.1
$region0: #{tpu_custom_call.1}
  #allocation0 [shape = 'u32[]', space=smem, size = 0x4, offset = 0x4, fixed_abs, tag = 'smem constant byte address 0x4 - core index']
  #allocation1 [shape = 'u32[72,128]{1,0:T(1,128)}', space=vmem, size = 0x9000, scoped, tag = 'internal scratch']
  #allocation2 [shape = 'f32[64,32]{1,0:T(8,128)}', space=vmem, size = 0x8000, scoped, tag = 'scratch operand']
  #allocation3 [shape = 's32[1]{0}', space=sflag, size = 0x4, scoped, tag = 'scoped memory for tpu_custom_call.1']
  #allocation4 [shape = 'u8[1024]{0}', space=smem, size = 0x400, scoped, tag = 'prefetched SMEM operand 0']
  %s0 = inlined_call_operand.hbm [shape: f32[2,4], index: 0, kind: input, shape index: {}]
  %s1 = inlined_call_operand.hbm [shape: f32[4,16,32], index: 1, kind: input, shape index: {}]
  %s2 = inlined_call_operand.hbm [shape: f32[2,32,32], index: 2, kind: input, shape index: {}]
  %s3 = inlined_call_operand.vmem [shape: f32[2,1,32], index: 3, kind: input, shape index: {}]
  %s4 = inlined_call_operand.hbm [shape: f32[2,16,32], index: 4, kind: output, shape index: {}]
  %s5 = sld [smem:[#allocation0]]
  $region65: #{tpu_custom_call.1} parent=0
    _
  %s7 = ssub.s32 1, %s5
  %s8 = scalar_select 0, %s7, %s5
  %s10 = sshll.u32 %s0, 4
  %s11 = int_to_ptr.hbm [resolvable:$true] %s10
  %13 = dma.hbm_to_smem %s11, 32, [#allocation4], [#allocation3]
  %15 = dma.done [#allocation3], 32
  %16 = sfence
  $region1: #{tpu_custom_call.1} parent=0
    #allocation5 [shape = 'u8[32768]{0}', space=vmem, size = 0x8000, scoped, tag = 'input window, operand 1, single buffered']
    #allocation6 [shape = 's32[2]{0}', space=sflag, size = 0x8, scoped, tag = 'scoped memory for tpu_custom_call.1']
    #allocation7 [shape = 's32[2]{0}', space=sflag, size = 0x8, scoped, tag = 'scoped memory for tpu_custom_call.1']
    #allocation8 [shape = 'u8[32768]{0}', space=vmem, size = 0x8000, scoped, tag = 'input window, operand 2']
    #allocation9 [shape = 's32[2]{0}', space=sflag, size = 0x8, scoped, tag = 'scoped memory for tpu_custom_call.1']
    #allocation10 [shape = 'u8[16384]{0}', space=vmem, size = 0x4000, scoped, tag = 'output window, operand 0, single buffered']
    %17 = vsyncpa [#allocation6], 0
    %18 = vsyncpa [#allocation9], 0
    %s19 = scalar_lea.sflag [#allocation9], 1
    %20 = vsyncpa %s19, 0
    %21 = vsyncpa [#allocation7], 0
    loop: start=0, step=1, limit=4
    $region2: #{tpu_custom_call.1} parent=1 // loop_pre_header
      _
    $region3: #{tpu_custom_call.1} parent=1 // loop_header
      %s23 = sphi 0, %s27
      %p24 = scmp.ge.s32.totalorder %s23, 4
      %s30 = sphi 0, %s42
      %s31 = sphi 0, %s38
      %s32 = sphi 0, %s30
      %s33 = sphi 0, %s31
      %s34 = sphi 0, %s32
      %s35 = sphi 0, %s33
      %s45 = sphi 0, %s47
      %s48 = sphi 0, %s45
      %s49 = sphi 0, %s48
      %s65 = sphi 0, %s49
      %s71 = sphi 0, %s73
      %s74 = sphi 0, %s71
      %s75 = sphi 0, %s74
      %s91 = sphi 0, %s75
      %s97 = sphi 0, %s99
      %s100 = sphi 0, %s97
      %s101 = sphi 0, %s100
      %s117 = sphi 0, %s101
      %s123 = sphi 0, %s125
      %s126 = sphi 0, %s123
      %s127 = sphi 0, %s126
      %s143 = sphi 0, %s127
    $region4: #{tpu_custom_call.1} parent=1 // loop_header_branch
      %26 = sbr.rel (%p24) target = $region8
    $region5: #{tpu_custom_call.1} parent=1 // loop_body
      %s28 = ssub.s32 %s23, 1
      %s29 = ssub.s32 %s23, 2
      %s36 = sadd.s32 1, %s31
      %p37 = scmp.ge.s32.totalorder %s36, 2
      %s38 = scalar_select %p37, 0, %s36
      %s39 = sadd.s32 1, %s30
      %s40 = scalar_select %p37, %s39, %s30
      %p41 = scmp.ge.s32.totalorder %s40, 1
      %s42 = scalar_select %p41, 0, %s40
      %s43 = ssub.s32 %s30, %s42
      %p44 = scmp.eq.s32.totalorder %s43, 0
      %s46 = sadd.s32 %s45, 1
      %s47 = scalar_select %p44, %s45, %s46
      %p50 = pneg %p44
      %p51 = scmp.eq.s32.totalorder %s23, 1
      %p52 = por %p50, %p51
      %p53 = scmp.ne.s32.totalorder %s45, %s48
      %p54 = scmp.eq.s32.totalorder %s23, 0
      %p55 = por %p53, %p54
      %p56 = scmp.ne.s32.totalorder %s45, %s48
      %p57 = scmp.eq.s32.totalorder %s28, 1
      %p58 = por %p56, %p57
      %p59 = scmp.ne.s32.totalorder %s48, %s49
      %p60 = scmp.eq.s32.totalorder %s28, 0
      %p61 = por %p59, %p60
      %p62 = scmp.ne.s32.totalorder %s48, %s49
      %p63 = scmp.eq.s32.totalorder %s29, 1
      %p64 = por %p62, %p63
      %p66 = scmp.ne.s32.totalorder %s49, %s65
      %p67 = scmp.eq.s32.totalorder %s29, 0
      %p68 = por %p66, %p67
      %s69 = ssub.s32 %s31, %s38
      %p70 = scmp.eq.s32.totalorder %s69, 0
      %s72 = sadd.s32 %s71, 1
      %s73 = scalar_select %p70, %s71, %s72
      %p76 = pneg %p70
      %p77 = scmp.eq.s32.totalorder %s23, 1
      %p78 = por %p76, %p77
      %p79 = scmp.ne.s32.totalorder %s71, %s74
      %p80 = scmp.eq.s32.totalorder %s23, 0
      %p81 = por %p79, %p80
      %p82 = scmp.ne.s32.totalorder %s71, %s74
      %p83 = scmp.eq.s32.totalorder %s28, 1
      %p84 = por %p82, %p83
      %p85 = scmp.ne.s32.totalorder %s74, %s75
      %p86 = scmp.eq.s32.totalorder %s28, 0
      %p87 = por %p85, %p86
      %p88 = scmp.ne.s32.totalorder %s74, %s75
      %p89 = scmp.eq.s32.totalorder %s29, 1
      %p90 = por %p88, %p89
      %p92 = scmp.ne.s32.totalorder %s75, %s91
      %p93 = scmp.eq.s32.totalorder %s29, 0
      %p94 = por %p92, %p93
      %s95 = ssub.s32 %s31, %s38
      %p96 = scmp.eq.s32.totalorder %s95, 0
      %s98 = sadd.s32 %s97, 1
      %s99 = scalar_select %p96, %s97, %s98
      %p102 = pneg %p96
      %p103 = scmp.eq.s32.totalorder %s23, 1
      %p104 = por %p102, %p103
      %p105 = scmp.ne.s32.totalorder %s97, %s100
      %p106 = scmp.eq.s32.totalorder %s23, 0
      %p107 = por %p105, %p106
      %p108 = scmp.ne.s32.totalorder %s97, %s100
      %p109 = scmp.eq.s32.totalorder %s28, 1
      %p110 = por %p108, %p109
      %p111 = scmp.ne.s32.totalorder %s100, %s101
      %p112 = scmp.eq.s32.totalorder %s28, 0
      %p113 = por %p111, %p112
      %p114 = scmp.ne.s32.totalorder %s100, %s101
      %p115 = scmp.eq.s32.totalorder %s29, 1
      %p116 = por %p114, %p115
      %p118 = scmp.ne.s32.totalorder %s101, %s117
      %p119 = scmp.eq.s32.totalorder %s29, 0
      %p120 = por %p118, %p119
      %s121 = ssub.s32 %s30, %s42
      %p122 = scmp.eq.s32.totalorder %s121, 0
      %s124 = sadd.s32 %s123, 1
      %s125 = scalar_select %p122, %s123, %s124
      %p128 = pneg %p122
      %p129 = scmp.eq.s32.totalorder %s23, 1
      %p130 = por %p128, %p129
      %p131 = scmp.ne.s32.totalorder %s123, %s126
      %p132 = scmp.eq.s32.totalorder %s23, 0
      %p133 = por %p131, %p132
      %p134 = scmp.ne.s32.totalorder %s123, %s126
      %p135 = scmp.eq.s32.totalorder %s28, 1
      %p136 = por %p134, %p135
      %p137 = scmp.ne.s32.totalorder %s126, %s127
      %p138 = scmp.eq.s32.totalorder %s28, 0
      %p139 = por %p137, %p138
      %p140 = scmp.ne.s32.totalorder %s126, %s127
      %p141 = scmp.eq.s32.totalorder %s29, 1
      %p142 = por %p140, %p141
      %p144 = scmp.ne.s32.totalorder %s127, %s143
      %p145 = scmp.eq.s32.totalorder %s29, 0
      %p146 = por %p144, %p145
      %p147 = scmp.le.s32.totalorder 1, %s23
      %p148 = scmp.lt.s32.totalorder %s23, 3
      %p149 = pnand %p147, %p148
      %p150 = pneg %p149
      // Predicated region
      $region9: #{tpu_custom_call.1} parent=5 // pred_check
        _
      $region10: #{tpu_custom_call.1} parent=5 // pred_check_branch
        %152 = sbr.rel (%p149) target = $region12
      $region11: #{tpu_custom_call.1} parent=5 // pred_region
        %s153 = ssub.s32 %s23, 1
        // Predicated region
        $region13: #{tpu_custom_call.1} parent=11 // pred_check
          %p154 = pneg %p61
        $region14: #{tpu_custom_call.1} parent=11 // pred_check_branch
          %156 = sbr.rel (%p154) target = $region16
        $region15: #{tpu_custom_call.1} parent=11 // pred_region
          %s157 = smul.u32 2, %s32
          %159 = vsyncadd [#allocation6], 0
          %s160 = smul.addr %s157, 8
          %s161 = scalar_lea.hbm %s1, %s160
          %s162 = sshll.u32 %s161, 4
          %s163 = int_to_ptr.hbm [resolvable:$true] %s162
          %s164 = sshll.u32 [#allocation5], 4
          %s165 = int_to_ptr.vmem [resolvable:$true] %s164
          %170 = dma.hbm_to_vmem [thread:$0]  %s163, 1024, %s165, [#allocation6], 128, 128, 8
        $region16: #{tpu_custom_call.1} parent=11 // pred_fallthru
          _
      $region12: #{tpu_custom_call.1} parent=5 // pred_fallthru
        _
      %p171 = scmp.lt.s32.totalorder %s23, 2
      // Predicated region
      $region17: #{tpu_custom_call.1} parent=5 // pred_check
        %p172 = pneg %p171
      $region18: #{tpu_custom_call.1} parent=5 // pred_check_branch
        %174 = sbr.rel (%p172) target = $region20
      $region19: #{tpu_custom_call.1} parent=5 // pred_region
        // Predicated region
        $region21: #{tpu_custom_call.1} parent=19 // pred_check
          %p175 = pneg %p81
        $region22: #{tpu_custom_call.1} parent=19 // pred_check_branch
          %177 = sbr.rel (%p175) target = $region24
        $region23: #{tpu_custom_call.1} parent=19 // pred_region
          %s178 = sand.u32 %s71, 1
          %s179 = scalar_lea.sflag [#allocation9], %s178
          %s180 = sand.u32 %s71, 1
          %s181 = smul.addr %s180, 32
          %s182 = scalar_lea.vmem [#allocation8], %s181
          %184 = vsyncadd %s179, 0
          %s185 = smul.addr %s31, 4
          %s186 = smul.addr %s185, 8
          %s187 = scalar_lea.hbm %s2, %s186
          %s188 = sshll.u32 %s187, 4
          %s189 = int_to_ptr.hbm [resolvable:$true] %s188
          %s190 = sshll.u32 %s182, 4
          %s191 = int_to_ptr.vmem [resolvable:$true] %s190
          %196 = dma.hbm_to_vmem [thread:$0]  %s189, 512, %s191, %s179, 128, 128, 8
        $region24: #{tpu_custom_call.1} parent=19 // pred_fallthru
          _
        // Predicated region
        $region25: #{tpu_custom_call.1} parent=19 // pred_check
          %p197 = pneg %p107
        $region26: #{tpu_custom_call.1} parent=19 // pred_check_branch
          %199 = sbr.rel (%p197) target = $region28
        $region27: #{tpu_custom_call.1} parent=19 // pred_region
          %p200 = scmp.lt.s32.totalorder %s31, 1
          %s201 = scalar_select %p200, %s31, 1
          %s202 = scalar_lea.vmem %s3, %s201
        $region28: #{tpu_custom_call.1} parent=19 // pred_fallthru
          _
      $region20: #{tpu_custom_call.1} parent=5 // pred_fallthru
        _
      %p203 = scmp.le.s32.totalorder 1, %s23
      %p204 = scmp.lt.s32.totalorder %s23, 3
      %p205 = pnand %p203, %p204
      %p206 = pneg %p205
      // Predicated region
      $region29: #{tpu_custom_call.1} parent=5 // pred_check
        _
      $region30: #{tpu_custom_call.1} parent=5 // pred_check_branch
        %208 = sbr.rel (%p205) target = $region32
      $region31: #{tpu_custom_call.1} parent=5 // pred_region
        %s209 = ssub.s32 %s23, 1
        // Predicated region
        $region33: #{tpu_custom_call.1} parent=31 // pred_check
          %p210 = pneg %p61
        $region34: #{tpu_custom_call.1} parent=31 // pred_check_branch
          %212 = sbr.rel (%p210) target = $region36
        $region35: #{tpu_custom_call.1} parent=31 // pred_region
          %214 = dma.done [#allocation6], 1024
        $region36: #{tpu_custom_call.1} parent=31 // pred_fallthru
          _
        %s215 = sand.u32 %s74, 1
        %s216 = scalar_lea.sflag [#allocation9], %s215
        %s217 = sand.u32 %s74, 1
        %s218 = smul.addr %s217, 32
        %s219 = scalar_lea.vmem [#allocation8], %s218
        // Predicated region
        $region37: #{tpu_custom_call.1} parent=31 // pred_check
          %p220 = pneg %p87
        $region38: #{tpu_custom_call.1} parent=31 // pred_check_branch
          %222 = sbr.rel (%p220) target = $region40
        $region39: #{tpu_custom_call.1} parent=31 // pred_region
          %224 = dma.done %s216, 512
        $region40: #{tpu_custom_call.1} parent=31 // pred_fallthru
          _
        %p225 = pneg %p61
        %p226 = pneg %p58
        %s227 = sand.u32 %s74, 1
        %s228 = scalar_lea.sflag [#allocation9], %s227
        %s229 = sand.u32 %s74, 1
        %s230 = smul.addr %s229, 32
        %s231 = scalar_lea.vmem [#allocation8], %s230
        %p232 = pneg %p87
        %p233 = pneg %p84
        %p234 = scmp.lt.s32.totalorder %s33, 1
        %s235 = scalar_select %p234, %s33, 1
        %s236 = scalar_lea.vmem %s3, %s235
        %p237 = pneg %p113
        %p238 = pneg %p110
        %p239 = pneg %p139
        %p240 = pneg %p136
        %s241 = smul.u32 2, %s32
        %p242 = scmp.lt.s32.totalorder %s33, 1
        %s243 = scalar_select %p242, %s33, 1
        %s244 = scalar_lea.vmem %s3, %s243
        %s245 = smul.u32 2, %s32
        %p246 = scmp.eq.s32.totalorder %s33, 0
        // Predicated region
        $region41: #{tpu_custom_call.1} parent=31 // pred_check
          %p247 = pneg %p246
        $region42: #{tpu_custom_call.1} parent=31 // pred_check_branch
          %249 = sbr.rel (%p247) target = $region44
        $region43: #{tpu_custom_call.1} parent=31 // pred_region
          %v250 = vld [vmem:[#allocation5] sm:$0xff]
          %v251 = vld [vmem:[#allocation5 + $0x8] sm:$0xff]
          %v252 = vld [vmem:[#allocation5 + $0x10] sm:$0xff]
          %v253 = vld [vmem:[#allocation5 + $0x18] sm:$0xff]
          %v254 = vld [vmem:[#allocation5 + $0x20] sm:$0xff]
          %v255 = vld [vmem:[#allocation5 + $0x28] sm:$0xff]
          %v256 = vld [vmem:[#allocation5 + $0x30] sm:$0xff]
          %v257 = vld [vmem:[#allocation5 + $0x38] sm:$0xff]
          %vm258 = vcmask 261120
          %259 = vst.msk [vmem:[#allocation2] sm:$0xff] %vm258, %v250
          %260 = vst.msk [vmem:[#allocation2 + $0x8] sm:$0xff] %vm258, %v251
          %261 = vst.msk [vmem:[#allocation2 + $0x10] sm:$0xff] %vm258, %v252
          %262 = vst.msk [vmem:[#allocation2 + $0x18] sm:$0xff] %vm258, %v253
          %263 = vst.msk [vmem:[#allocation2 + $0x20] sm:$0xff] %vm258, %v254
          %264 = vst.msk [vmem:[#allocation2 + $0x28] sm:$0xff] %vm258, %v255
          %265 = vst.msk [vmem:[#allocation2 + $0x30] sm:$0xff] %vm258, %v256
          %266 = vst.msk [vmem:[#allocation2 + $0x38] sm:$0xff] %vm258, %v257
        $region44: #{tpu_custom_call.1} parent=31 // pred_fallthru
          _
        %v267 = vld [vmem:[#allocation2] sm:$0xff]
        %v268 = vld [vmem:[#allocation2 + $0x8] sm:$0xff]
        %v269 = vld [vmem:[#allocation2 + $0x10] sm:$0xff]
        %v270 = vld [vmem:[#allocation2 + $0x18] sm:$0xff]
        %v271 = vld [vmem:[#allocation2 + $0x20] sm:$0xff]
        %v272 = vld [vmem:[#allocation2 + $0x28] sm:$0xff]
        %v273 = vld [vmem:[#allocation2 + $0x30] sm:$0xff]
        %v274 = vld [vmem:[#allocation2 + $0x38] sm:$0xff]
        %v275 = vld [vmem:[%s219] sm:$0xff]
        %v276 = vld [vmem:[%s219 + $0x8] sm:$0xff]
        %v277 = vld [vmem:[%s219 + $0x10] sm:$0xff]
        %v278 = vld [vmem:[%s219 + $0x18] sm:$0xff]
        %v279 = vld [vmem:[%s244] sm:$0x1]
        %v281 = vperm.slane %v279, 0
        %vm283 = vcmask 261120
        %v285 = vsel %vm283, %v267, 0
        %v288 = vsel %vm283, %v268, 0
        %v291 = vsel %vm283, %v269, 0
        %v294 = vsel %vm283, %v270, 0
        %v297 = vsel %vm283, %v271, 0
        %v300 = vsel %vm283, %v272, 0
        %v303 = vsel %vm283, %v273, 0
        %v306 = vsel %vm283, %v274, 0
        %308 = vmatpush.msra.mxu0 0.0
        %309 = vmatpush.msra.mxu0 0.0
        %310 = vmatpush.msra.mxu0 0.0
        %311 = vmatpush.msra.mxu0 0.0
        %312 = vmatpush.msra.mxu0 0.0
        %313 = vmatpush.msra.mxu0 0.0
        %314 = vmatpush.msra.mxu0 0.0
        %315 = vmatpush.msra.mxu0 0.0
        %316 = vmatpush.msra.mxu0 0.0
        %317 = vmatpush.msra.mxu0 0.0
        %318 = vmatpush.msra.mxu0 0.0
        %319 = vmatpush.msra.mxu0 0.0
        %320 = vmatpush.msra.mxu0 %v278
        %321 = vmatpush.msra.mxu0 %v277
        %322 = vmatpush.msra.mxu0 %v276
        %323 = vmatpush.msra.mxu0 %v275
        %324 = vmatmul.f32.gmra.mxu0 %v285
        %v325 = vpop.f32.mrf.mxu0
        %v326 = vadd.f32 %v281, %v325
        %327 = vmatmul.f32.gmra.mxu0 %v288
        %v328 = vpop.f32.mrf.mxu0
        %v329 = vadd.f32 %v281, %v328
        %330 = vmatmul.f32.gmra.mxu0 %v291
        %v331 = vpop.f32.mrf.mxu0
        %v332 = vadd.f32 %v281, %v331
        %333 = vmatmul.f32.gmra.mxu0 %v294
        %v334 = vpop.f32.mrf.mxu0
        %v335 = vadd.f32 %v281, %v334
        %336 = vmatmul.f32.gmra.mxu0 %v297
        %v337 = vpop.f32.mrf.mxu0
        %v338 = vadd.f32 %v281, %v337
        %339 = vmatmul.f32.gmra.mxu0 %v300
        %v340 = vpop.f32.mrf.mxu0
        %v341 = vadd.f32 %v281, %v340
        %342 = vmatmul.f32.gmra.mxu0 %v303
        %v343 = vpop.f32.mrf.mxu0
        %v344 = vadd.f32 %v281, %v343
        %345 = vmatmul.f32.gmra.mxu0 %v306
        %v346 = vpop.f32.mrf.mxu0
        %v347 = vadd.f32 %v281, %v346
        %348 = vdwg.mxu0
        %v349 = vxor.u32 %v326, 2147483648
        %v350 = vxor.u32 %v329, 2147483648
        %v351 = vxor.u32 %v332, 2147483648
        %v352 = vxor.u32 %v335, 2147483648
        %v353 = vxor.u32 %v338, 2147483648
        %v354 = vxor.u32 %v341, 2147483648
        %v355 = vxor.u32 %v344, 2147483648
        %v356 = vxor.u32 %v347, 2147483648
        %v357 = vmul.f32 %v349, 1.442695
        %v358 = vpow.pop %v357
        %v359 = vmul.f32 %v350, 1.442695
        %v360 = vpow.pop %v359
        %v361 = vmul.f32 %v351, 1.442695
        %v362 = vpow.pop %v361
        %v363 = vmul.f32 %v352, 1.442695
        %v364 = vpow.pop %v363
        %v365 = vmul.f32 %v353, 1.442695
        %v366 = vpow.pop %v365
        %v367 = vmul.f32 %v354, 1.442695
        %v368 = vpow.pop %v367
        %v369 = vmul.f32 %v355, 1.442695
        %v370 = vpow.pop %v369
        %v371 = vmul.f32 %v356, 1.442695
        %v372 = vpow.pop %v371
        %v373 = vadd.f32 %v358, 1.0
        %v374 = vadd.f32 %v360, 1.0
        %v375 = vadd.f32 %v362, 1.0
        %v376 = vadd.f32 %v364, 1.0
        %v377 = vadd.f32 %v366, 1.0
        %v378 = vadd.f32 %v368, 1.0
        %v379 = vadd.f32 %v370, 1.0
        %v380 = vadd.f32 %v372, 1.0
        %v381 = vrcp.pop %v373
        %v382 = vmul.f32 %v373, %v381
        %v383 = vsub.f32 1.0, %v382
        %v384 = vmul.f32 %v381, %v383
        %v385 = vadd.f32 %v381, %v384
        %vm386 = vweird.f32 %v373
        %vm387 = vweird.f32 %v381
        %vm388 = vmor %vm386, %vm387
        %v389 = vsel %vm388, %v381, %v385
        %v390 = vand.u32 2147483647, %v373
        %vm391 = vcmp.eq.f32.partialorder %v390, 8.507059e+37
        %v392 = vand.u32 %v373, 2147483648
        %v393 = vor.u32 1.1754944e-38, %v392
        %v394 = vsel %vm391, %v393, %v389
        %v395 = vmul.f32 1.0, %v394
        %v396 = vrcp.pop %v374
        %v397 = vmul.f32 %v374, %v396
        %v398 = vsub.f32 1.0, %v397
        %v399 = vmul.f32 %v396, %v398
        %v400 = vadd.f32 %v396, %v399
        %vm401 = vweird.f32 %v374
        %vm402 = vweird.f32 %v396
        %vm403 = vmor %vm401, %vm402
        %v404 = vsel %vm403, %v396, %v400
        %v405 = vand.u32 2147483647, %v374
        %vm406 = vcmp.eq.f32.partialorder %v405, 8.507059e+37
        %v407 = vand.u32 %v374, 2147483648
        %v408 = vor.u32 1.1754944e-38, %v407
        %v409 = vsel %vm406, %v408, %v404
        %v410 = vmul.f32 1.0, %v409
        %v411 = vrcp.pop %v375
        %v412 = vmul.f32 %v375, %v411
        %v413 = vsub.f32 1.0, %v412
        %v414 = vmul.f32 %v411, %v413
        %v415 = vadd.f32 %v411, %v414
        %vm416 = vweird.f32 %v375
        %vm417 = vweird.f32 %v411
        %vm418 = vmor %vm416, %vm417
        %v419 = vsel %vm418, %v411, %v415
        %v420 = vand.u32 2147483647, %v375
        %vm421 = vcmp.eq.f32.partialorder %v420, 8.507059e+37
        %v422 = vand.u32 %v375, 2147483648
        %v423 = vor.u32 1.1754944e-38, %v422
        %v424 = vsel %vm421, %v423, %v419
        %v425 = vmul.f32 1.0, %v424
        %v426 = vrcp.pop %v376
        %v427 = vmul.f32 %v376, %v426
        %v428 = vsub.f32 1.0, %v427
        %v429 = vmul.f32 %v426, %v428
        %v430 = vadd.f32 %v426, %v429
        %vm431 = vweird.f32 %v376
        %vm432 = vweird.f32 %v426
        %vm433 = vmor %vm431, %vm432
        %v434 = vsel %vm433, %v426, %v430
        %v435 = vand.u32 2147483647, %v376
        %vm436 = vcmp.eq.f32.partialorder %v435, 8.507059e+37
        %v437 = vand.u32 %v376, 2147483648
        %v438 = vor.u32 1.1754944e-38, %v437
        %v439 = vsel %vm436, %v438, %v434
        %v440 = vmul.f32 1.0, %v439
        %v441 = vrcp.pop %v377
        %v442 = vmul.f32 %v377, %v441
        %v443 = vsub.f32 1.0, %v442
        %v444 = vmul.f32 %v441, %v443
        %v445 = vadd.f32 %v441, %v444
        %vm446 = vweird.f32 %v377
        %vm447 = vweird.f32 %v441
        %vm448 = vmor %vm446, %vm447
        %v449 = vsel %vm448, %v441, %v445
        %v450 = vand.u32 2147483647, %v377
        %vm451 = vcmp.eq.f32.partialorder %v450, 8.507059e+37
        %v452 = vand.u32 %v377, 2147483648
        %v453 = vor.u32 1.1754944e-38, %v452
        %v454 = vsel %vm451, %v453, %v449
        %v455 = vmul.f32 1.0, %v454
        %v456 = vrcp.pop %v378
        %v457 = vmul.f32 %v378, %v456
        %v458 = vsub.f32 1.0, %v457
        %v459 = vmul.f32 %v456, %v458
        %v460 = vadd.f32 %v456, %v459
        %vm461 = vweird.f32 %v378
        %vm462 = vweird.f32 %v456
        %vm463 = vmor %vm461, %vm462
        %v464 = vsel %vm463, %v456, %v460
        %v465 = vand.u32 2147483647, %v378
        %vm466 = vcmp.eq.f32.partialorder %v465, 8.507059e+37
        %v467 = vand.u32 %v378, 2147483648
        %v468 = vor.u32 1.1754944e-38, %v467
        %v469 = vsel %vm466, %v468, %v464
        %v470 = vmul.f32 1.0, %v469
        %v471 = vrcp.pop %v379
        %v472 = vmul.f32 %v379, %v471
        %v473 = vsub.f32 1.0, %v472
        %v474 = vmul.f32 %v471, %v473
        %v475 = vadd.f32 %v471, %v474
        %vm476 = vweird.f32 %v379
        %vm477 = vweird.f32 %v471
        %vm478 = vmor %vm476, %vm477
        %v479 = vsel %vm478, %v471, %v475
        %v480 = vand.u32 2147483647, %v379
        %vm481 = vcmp.eq.f32.partialorder %v480, 8.507059e+37
        %v482 = vand.u32 %v379, 2147483648
        %v483 = vor.u32 1.1754944e-38, %v482
        %v484 = vsel %vm481, %v483, %v479
        %v485 = vmul.f32 1.0, %v484
        %v486 = vrcp.pop %v380
        %v487 = vmul.f32 %v380, %v486
        %v488 = vsub.f32 1.0, %v487
        %v489 = vmul.f32 %v486, %v488
        %v490 = vadd.f32 %v486, %v489
        %vm491 = vweird.f32 %v380
        %vm492 = vweird.f32 %v486
        %vm493 = vmor %vm491, %vm492
        %v494 = vsel %vm493, %v486, %v490
        %v495 = vand.u32 2147483647, %v380
        %vm496 = vcmp.eq.f32.partialorder %v495, 8.507059e+37
        %v497 = vand.u32 %v380, 2147483648
        %v498 = vor.u32 1.1754944e-38, %v497
        %v499 = vsel %vm496, %v498, %v494
        %v500 = vmul.f32 1.0, %v499
        %v501 = vmul.f32 %v326, %v395
        %v502 = vmul.f32 %v329, %v410
        %v503 = vmul.f32 %v332, %v425
        %v504 = vmul.f32 %v335, %v440
        %v505 = vmul.f32 %v338, %v455
        %v506 = vmul.f32 %v341, %v470
        %v507 = vmul.f32 %v344, %v485
        %v508 = vmul.f32 %v347, %v500
        %v509 = vadd.f32 %v267, %v501
        %v510 = vadd.f32 %v268, %v502
        %v511 = vadd.f32 %v269, %v503
        %v512 = vadd.f32 %v270, %v504
        %v513 = vadd.f32 %v271, %v505
        %v514 = vadd.f32 %v272, %v506
        %v515 = vadd.f32 %v273, %v507
        %v516 = vadd.f32 %v274, %v508
        %p517 = scmp.lt.s32.totalorder %s33, 1
        // Predicated region
        $region45: #{tpu_custom_call.1} parent=31 // pred_check
          %p518 = pneg %p517
        $region46: #{tpu_custom_call.1} parent=31 // pred_check_branch
          %520 = sbr.rel (%p518) target = $region48
        $region47: #{tpu_custom_call.1} parent=31 // pred_region
          %521 = vst.msk [vmem:[#allocation2] sm:$0xff] %vm283, %v509
          %522 = vst.msk [vmem:[#allocation2 + $0x8] sm:$0xff] %vm283, %v510
          %523 = vst.msk [vmem:[#allocation2 + $0x10] sm:$0xff] %vm283, %v511
          %524 = vst.msk [vmem:[#allocation2 + $0x18] sm:$0xff] %vm283, %v512
          %525 = vst.msk [vmem:[#allocation2 + $0x20] sm:$0xff] %vm283, %v513
          %526 = vst.msk [vmem:[#allocation2 + $0x28] sm:$0xff] %vm283, %v514
          %527 = vst.msk [vmem:[#allocation2 + $0x30] sm:$0xff] %vm283, %v515
          %528 = vst.msk [vmem:[#allocation2 + $0x38] sm:$0xff] %vm283, %v516
        $region48: #{tpu_custom_call.1} parent=31 // pred_fallthru
          _
        %p529 = scmp.eq.s32.totalorder %s33, 1
        // Predicated region
        $region49: #{tpu_custom_call.1} parent=31 // pred_check
          %p530 = pneg %p529
        $region50: #{tpu_custom_call.1} parent=31 // pred_check_branch
          %532 = sbr.rel (%p530) target = $region52
        $region51: #{tpu_custom_call.1} parent=31 // pred_region
          %s533 = sld [smem:[#allocation4]]
          %v534 = vstv %s533
          %v535 = vmul.f32 %v534, %v509
          %v536 = vmul.f32 %v534, %v510
          %s537 = sld [smem:[#allocation4 + $0x1]]
          %v538 = vstv %s537
          %v539 = vmul.f32 %v538, %v511
          %v540 = vmul.f32 %v538, %v512
          %v541 = vadd.f32 %v535, %v539
          %v542 = vadd.f32 %v536, %v540
          %s543 = sld [smem:[#allocation4 + $0x2]]
          %v544 = vstv %s543
          %v545 = vmul.f32 %v544, %v513
          %v546 = vmul.f32 %v544, %v514
          %v547 = vadd.f32 %v541, %v545
          %v548 = vadd.f32 %v542, %v546
          %s549 = sld [smem:[#allocation4 + $0x3]]
          %v550 = vstv %s549
          %v551 = vmul.f32 %v550, %v515
          %v552 = vmul.f32 %v550, %v516
          %v553 = vadd.f32 %v547, %v551
          %v554 = vadd.f32 %v548, %v552
          %555 = vst.msk [vmem:[#allocation10] sm:$0xff] %vm283, %v553
          %556 = vst.msk [vmem:[#allocation10 + $0x8] sm:$0xff] %vm283, %v554
          %s557 = sld [smem:[#allocation4 + $0x80]]
          %v558 = vstv %s557
          %v559 = vmul.f32 %v558, %v509
          %v560 = vmul.f32 %v558, %v510
          %s561 = sld [smem:[#allocation4 + $0x81]]
          %v562 = vstv %s561
          %v563 = vmul.f32 %v562, %v511
          %v564 = vmul.f32 %v562, %v512
          %v565 = vadd.f32 %v559, %v563
          %v566 = vadd.f32 %v560, %v564
          %s567 = sld [smem:[#allocation4 + $0x82]]
          %v568 = vstv %s567
          %v569 = vmul.f32 %v568, %v513
          %v570 = vmul.f32 %v568, %v514
          %v571 = vadd.f32 %v565, %v569
          %v572 = vadd.f32 %v566, %v570
          %s573 = sld [smem:[#allocation4 + $0x83]]
          %v574 = vstv %s573
          %v575 = vmul.f32 %v574, %v515
          %v576 = vmul.f32 %v574, %v516
          %v577 = vadd.f32 %v571, %v575
          %v578 = vadd.f32 %v572, %v576
          %s579 = scalar_lea.vmem [#allocation10], 16
          %580 = vst.msk [vmem:[%s579] sm:$0xff] %vm283, %v577
          %581 = vst.msk [vmem:[%s579 + $0x8] sm:$0xff] %vm283, %v578
        $region52: #{tpu_custom_call.1} parent=31 // pred_fallthru
          _
        // Predicated region
        $region53: #{tpu_custom_call.1} parent=31 // pred_check
          %p582 = pneg %p136
        $region54: #{tpu_custom_call.1} parent=31 // pred_check_branch
          %584 = sbr.rel (%p582) target = $region56
        $region55: #{tpu_custom_call.1} parent=31 // pred_region
          %s585 = smul.u32 2, %s32
          %587 = vsyncadd [#allocation7], 0
          %s588 = smul.addr %s585, 8
          %s589 = scalar_lea.hbm %s4, %s588
          %s590 = sshll.u32 [#allocation10], 4
          %s591 = int_to_ptr.vmem [resolvable:$true] %s590
          %s592 = sshll.u32 %s589, 4
          %s593 = int_to_ptr.hbm [resolvable:$true] %s592
          %598 = dma.vmem_to_hbm [thread:$0]  %s591, 512, %s593, [#allocation7], 128, 128, 8
        $region56: #{tpu_custom_call.1} parent=31 // pred_fallthru
          _
        // Predicated region
        $region57: #{tpu_custom_call.1} parent=31 // pred_check
          %p599 = pneg %p136
        $region58: #{tpu_custom_call.1} parent=31 // pred_check_branch
          %601 = sbr.rel (%p599) target = $region60
        $region59: #{tpu_custom_call.1} parent=31 // pred_region
          %603 = dma.done [#allocation7], 512
        $region60: #{tpu_custom_call.1} parent=31 // pred_fallthru
          _
      $region32: #{tpu_custom_call.1} parent=5 // pred_fallthru
        _
      %p604 = scmp.le.s32.totalorder 2, %s23
      // Predicated region
      $region61: #{tpu_custom_call.1} parent=5 // pred_check
        %p605 = pneg %p604
      $region62: #{tpu_custom_call.1} parent=5 // pred_check_branch
        %607 = sbr.rel (%p605) target = $region64
      $region63: #{tpu_custom_call.1} parent=5 // pred_region
        %s608 = ssub.s32 %s23, 2
      $region64: #{tpu_custom_call.1} parent=5 // pred_fallthru
        _
    $region6: #{tpu_custom_call.1} parent=1 // loop_footer
      %s27 = sadd.s32 1, %s23
    $region7: #{tpu_custom_call.1} parent=1 // loop_footer_branch
      %22 = sbr.rel target = $region3
    $region8: #{tpu_custom_call.1} parent=1 // loop_exit
      _
    %609 = vsyncpa [#allocation6], 1
    %s610 = scalar_lea.sflag [#allocation6], 1
    %611 = vsyncpa %s610, 1
    %612 = vsyncpa [#allocation9], 1
    %s613 = scalar_lea.sflag [#allocation9], 1
    %614 = vsyncpa %s613, 1
    %615 = vsyncpa [#allocation7], 1
    %s616 = scalar_lea.sflag [#allocation7], 1
    %617 = vsyncpa %s616, 1

</llo_original>
